<compile_context>
chip_gen: v5e
topology: v5e:2x2
jax: 0.10.0
libtpu: 0.0.40
codegen_flags: <defaults>
</compile_context>

<pallas_src>
import functools

import jax
import jax.numpy as jnp
import numpy as np
from jax.experimental import pallas as pl
from jax.experimental.pallas import tpu as pltpu

EPS = 1e-5                      # torch.nn.LayerNorm default eps
SQRT_HALF = 0.7071067811865476  # 1/sqrt(2)


def _round_up(a, m):
    return -(-a // m) * m


def _gelu(x, approximate):
    if approximate:
        # tanh-approx GELU: tanh uses the otherwise-idle EUP slot so the GELU
        # hides under the MXU matmuls.
        return jax.nn.gelu(x, approximate=True)
    # exact (erf) GELU -- strict torch.nn.GELU() parity (VALU polynomial).
    return 0.5 * x * (1.0 + jax.lax.erf(x * SQRT_HALF))


# -------------------------- kernel --------------------------


def _ff_kernel(compute_dtype, approximate_gelu,
               x_ref, g_ref, b_ref, w1_ref, b1_ref, w2_ref, b2_ref, o_ref):
    x = x_ref[...].astype(jnp.float32)                       # (bm, D)
    inv_d = jnp.float32(1.0 / x.shape[-1])

    # LayerNorm in f32 -- single data pass for both statistics.
    s1 = jnp.sum(x, axis=-1, keepdims=True)
    s2 = jnp.sum(x * x, axis=-1, keepdims=True)
    mu = s1 * inv_d
    var = jnp.maximum(s2 * inv_d - mu * mu, 0.0)
    xn = (x - mu) * jax.lax.rsqrt(var + EPS) * g_ref[...] + b_ref[...]

    # Linear 1 (bf16 operands, f32 accumulation) + GELU
    h = jnp.dot(xn.astype(compute_dtype), w1_ref[...],
                preferred_element_type=jnp.float32) + b1_ref[...]
    h = _gelu(h, approximate_gelu)

    # Linear 2 (bf16 operands, f32 accumulation)
    y = jnp.dot(h.astype(compute_dtype), w2_ref[...],
                preferred_element_type=jnp.float32) + b2_ref[...]

    o_ref[...] = y.astype(o_ref.dtype)


# -------------------------- wrapper --------------------------


def _param_spec(a, single_buffer):
    """Full-shape, grid-resident parameter block."""
    nd = a.ndim
    idx = lambda i, _nd=nd: (0,) * _nd
    if single_buffer:
        # Constant index_map => DMA happens once; drop the 2nd pipeline buffer.
        return pl.BlockSpec(a.shape, idx, pipeline_mode=pl.Buffered(1))
    return pl.BlockSpec(a.shape, idx)


def _auto_block_m(M, target=256):
    """Pick a row tile: multiple of 16, <= target, and (when there is enough
    work) leaving >= 2 grid steps so v7x's two TensorCores are both used."""
    m16 = _round_up(max(M, 1), 16)
    bm = min(target, m16)
    if m16 <= bm and m16 >= 32:
        bm = _round_up(-(-m16 // 2), 16)   # split into ~2 tiles
    return bm


def feed_forward(x, gamma, beta, w1, b1, w2, b2, *,
                 block_m=None, compute_dtype=jnp.bfloat16,
                 approximate_gelu=True):
    """FeedForward forward pass.

    x: (..., D) float32; w1: (D, H); b1: (H,); w2: (H, D); b2: (D,);
    gamma/beta: (D,) LayerNorm affine params.
    """
    orig_shape = x.shape
    D = x.shape[-1]
    H = w1.shape[1]

    x2 = x.reshape(-1, D)                                    # (M, D)
    M = x2.shape[0]

    if block_m is None:
        block_m = _auto_block_m(M)
    assert block_m % 16 == 0, "block_m must be a multiple of 16 (bf16 sublane packing)"

    m_pad = _round_up(M, block_m)
    if m_pad != M:
        x2 = jnp.pad(x2, ((0, m_pad - M), (0, 0)))
    grid_m = m_pad // block_m

    # Cast weight matrices to bf16 once in the wrapper (halves weight DMA,
    # native MXU operand dtype). Biases / LN params stay f32 rows.
    w1c = w1.astype(compute_dtype)
    w2c = w2.astype(compute_dtype)
    gr = gamma.reshape(1, D).astype(jnp.float32)
    br = beta.reshape(1, D).astype(jnp.float32)
    b1r = b1.reshape(1, H).astype(jnp.float32)
    b2r = b2.reshape(1, D).astype(jnp.float32)
    params = (gr, br, w1c, b1r, w2c, b2r)

    itemsize_w = jnp.dtype(compute_dtype).itemsize

    # Explicit scoped-VMEM limit: computed footprint with headroom, clamped to
    # [32 MiB, 64 MiB] (valid on v5e/v6e 128 MiB and v7x 64 MiB per TC).
    est = (2 * block_m * D * 4                 # x double buffer
           + 2 * block_m * D * 4               # out double buffer
           + (D * H + H * D) * itemsize_w      # weights (single-buffered)
           + 2 * block_m * H * 4               # f32 hidden tile + headroom
           + (3 * D + H) * 4)                  # small params
    vmem_limit = int(min(64 << 20, max(32 << 20, 2 * est)))

    cost = pl.CostEstimate(
        flops=4 * m_pad * D * H + 10 * m_pad * (D + H),
        transcendentals=m_pad * H,
        bytes_accessed=(2 * m_pad * D * 4                    # x read + out write
                        + (D * H + H * D) * itemsize_w       # weights
                        + (3 * D + H) * 4))                  # ln params + biases

    x_spec = pl.BlockSpec((block_m, D), lambda i: (i, 0))
    kernel = functools.partial(_ff_kernel, compute_dtype, approximate_gelu)

    def _call(single_buffer_params):
        return pl.pallas_call(
            kernel,
            out_shape=jax.ShapeDtypeStruct((m_pad, D), x.dtype),
            grid=(grid_m,),
            in_specs=[x_spec] + [_param_spec(a, single_buffer_params)
                                 for a in params],
            out_specs=x_spec,
            compiler_params=pltpu.CompilerParams(
                dimension_semantics=("parallel",),
                vmem_limit_bytes=vmem_limit),
            cost_estimate=cost,
        )(x2, *params)

    try:
        out = _call(True)
    except Exception:
        # Older JAX without single-buffer pipeline_mode support: fall back to
        # default double-buffered resident params (correct, more VMEM).
        out = _call(False)

    return out[:M].reshape(orig_shape)


# -------------------------- pure-JAX reference --------------------------


def ref_feed_forward(x, gamma, beta, w1, b1, w2, b2,
                     compute_dtype=jnp.bfloat16, approximate_gelu=True):
    xf = x.astype(jnp.float32)
    mu = jnp.mean(xf, axis=-1, keepdims=True)
    var = jnp.mean((xf - mu) ** 2, axis=-1, keepdims=True)
    xn = (xf - mu) * jax.lax.rsqrt(var + EPS) * gamma + beta
    h = jnp.dot(xn.astype(compute_dtype), w1.astype(compute_dtype),
                preferred_element_type=jnp.float32) + b1
    h = _gelu(h, approximate_gelu)
    y = jnp.dot(h.astype(compute_dtype), w2.astype(compute_dtype),
                preferred_element_type=jnp.float32) + b2
    return y


# -------------------------- main --------------------------


if __name__ == "__main__":
    # Small shapes consistent with the module: FeedForward(dim=32, hidden_dim=64),
    # input x: (B=2, N=8, D=32).
    B, N, D, HID = 2, 8, 32, 64

    key = jax.random.PRNGKey(0)
    ks = jax.random.split(key, 7)
    x = jax.random.normal(ks[0], (B, N, D), jnp.float32)
    gamma = 1.0 + 0.05 * jax.random.normal(ks[1], (D,), jnp.float32)
    beta = 0.05 * jax.random.normal(ks[2], (D,), jnp.float32)
    w1 = 0.05 * jax.random.normal(ks[3], (D, HID), jnp.float32)
    b1 = 0.05 * jax.random.normal(ks[4], (HID,), jnp.float32)
    w2 = 0.05 * jax.random.normal(ks[5], (HID, D), jnp.float32)
    b2 = 0.05 * jax.random.normal(ks[6], (D,), jnp.float32)

    out = feed_forward(x, gamma, beta, w1, b1, w2, b2)
    out = jax.block_until_ready(out)

    ref = ref_feed_forward(x, gamma, beta, w1, b1, w2, b2)
    np.testing.assert_allclose(np.asarray(out), np.asarray(ref),
                               rtol=2e-3, atol=2e-3)

    print("KERNEL_OK")
</pallas_src>

<mosaic_0001>
module attributes {stable_mosaic.version = 11 : i64} {
  func.func @_ff_kernel(%arg0: i32, %arg1: memref<16x32xf32, #tpu.memory_space<vmem>>, %arg2: memref<1x32xf32, #tpu.memory_space<vmem>>, %arg3: memref<1x32xf32, #tpu.memory_space<vmem>>, %arg4: memref<32x64xbf16, #tpu.memory_space<vmem>>, %arg5: memref<1x64xf32, #tpu.memory_space<vmem>>, %arg6: memref<64x32xbf16, #tpu.memory_space<vmem>>, %arg7: memref<1x32xf32, #tpu.memory_space<vmem>>, %arg8: memref<16x32xf32, #tpu.memory_space<vmem>>) attributes {dimension_semantics = [#tpu.dimension_semantics<parallel>], iteration_bounds = array<i64: 1>, scalar_prefetch = 0 : i64, scratch_operands = 0 : i64, tpu.core_type = #tpu.core_type<tc>, window_params = [{transform_indices = @transform_0, window_bounds = array<i64: 16, 32>}, {pipeline_mode = #tpu.pipeline_mode<synchronous>, transform_indices = @transform_1, window_bounds = array<i64: 1, 32>}, {pipeline_mode = #tpu.pipeline_mode<synchronous>, transform_indices = @transform_2, window_bounds = array<i64: 1, 32>}, {pipeline_mode = #tpu.pipeline_mode<synchronous>, transform_indices = @transform_3, window_bounds = array<i64: 32, 64>}, {pipeline_mode = #tpu.pipeline_mode<synchronous>, transform_indices = @transform_4, window_bounds = array<i64: 1, 64>}, {pipeline_mode = #tpu.pipeline_mode<synchronous>, transform_indices = @transform_5, window_bounds = array<i64: 64, 32>}, {pipeline_mode = #tpu.pipeline_mode<synchronous>, transform_indices = @transform_6, window_bounds = array<i64: 1, 32>}, {transform_indices = @transform_7, window_bounds = array<i64: 16, 32>}]} {
    %c0 = arith.constant 0 : index
    %c0_0 = arith.constant 0 : index
    %0 = vector.load %arg1[%c0, %c0_0] : memref<16x32xf32, #tpu.memory_space<vmem>>, vector<16x32xf32>
    %cst = arith.constant dense<0.000000e+00> : vector<16xf32>
    %1 = vector.multi_reduction <add>, %0, %cst [1] : vector<16x32xf32> to vector<16xf32>
    %2 = vector.shape_cast %1 : vector<16xf32> to vector<16x1xf32>
    %3 = arith.mulf %0, %0 : vector<16x32xf32>
    %cst_1 = arith.constant dense<0.000000e+00> : vector<16xf32>
    %4 = vector.multi_reduction <add>, %3, %cst_1 [1] : vector<16x32xf32> to vector<16xf32>
    %5 = vector.shape_cast %4 : vector<16xf32> to vector<16x1xf32>
    %cst_2 = arith.constant 3.125000e-02 : f32
    %6 = vector.broadcast %cst_2 : f32 to vector<16x1xf32>
    %7 = arith.mulf %2, %6 : vector<16x1xf32>
    %cst_3 = arith.constant 3.125000e-02 : f32
    %8 = vector.broadcast %cst_3 : f32 to vector<16x1xf32>
    %9 = arith.mulf %5, %8 : vector<16x1xf32>
    %10 = arith.mulf %7, %7 : vector<16x1xf32>
    %11 = arith.subf %9, %10 : vector<16x1xf32>
    %cst_4 = arith.constant 0.000000e+00 : f32
    %12 = vector.broadcast %cst_4 : f32 to vector<16x1xf32>
    %13 = arith.maximumf %11, %12 : vector<16x1xf32>
    %14 = vector.broadcast %7 : vector<16x1xf32> to vector<16x32xf32>
    %15 = arith.subf %0, %14 : vector<16x32xf32>
    %cst_5 = arith.constant 9.99999974E-6 : f32
    %16 = vector.broadcast %cst_5 : f32 to vector<16x1xf32>
    %17 = arith.addf %13, %16 : vector<16x1xf32>
    %18 = math.rsqrt %17 : vector<16x1xf32>
    %19 = vector.broadcast %18 : vector<16x1xf32> to vector<16x32xf32>
    %20 = arith.mulf %15, %19 : vector<16x32xf32>
    %c0_6 = arith.constant 0 : index
    %c0_7 = arith.constant 0 : index
    %21 = vector.load %arg2[%c0_6, %c0_7] : memref<1x32xf32, #tpu.memory_space<vmem>>, vector<1x32xf32>
    %22 = vector.broadcast %21 : vector<1x32xf32> to vector<16x32xf32>
    %23 = arith.mulf %20, %22 : vector<16x32xf32>
    %c0_8 = arith.constant 0 : index
    %c0_9 = arith.constant 0 : index
    %24 = vector.load %arg3[%c0_8, %c0_9] : memref<1x32xf32, #tpu.memory_space<vmem>>, vector<1x32xf32>
    %25 = vector.broadcast %24 : vector<1x32xf32> to vector<16x32xf32>
    %26 = arith.addf %23, %25 : vector<16x32xf32>
    %27 = arith.truncf %26 : vector<16x32xf32> to vector<16x32xbf16>
    %c0_10 = arith.constant 0 : index
    %c0_11 = arith.constant 0 : index
    %28 = vector.load %arg4[%c0_10, %c0_11] : memref<32x64xbf16, #tpu.memory_space<vmem>>, vector<32x64xbf16>
    %cst_12 = arith.constant dense<0.000000e+00> : vector<16x64xf32>
    %29 = tpu.matmul %27, %28, %cst_12 {dimension_numbers = #tpu.dot_dimension_numbers<[1], [0], [0], [1], [0, 0, 1, 1], [], []>} : vector<16x32xbf16>, vector<32x64xbf16>, vector<16x64xf32> -> vector<16x64xf32>
    %c0_13 = arith.constant 0 : index
    %c0_14 = arith.constant 0 : index
    %30 = vector.load %arg5[%c0_13, %c0_14] : memref<1x64xf32, #tpu.memory_space<vmem>>, vector<1x64xf32>
    %31 = vector.broadcast %30 : vector<1x64xf32> to vector<16x64xf32>
    %32 = arith.addf %29, %31 : vector<16x64xf32>
    %33 = arith.mulf %32, %32 : vector<16x64xf32>
    %34 = arith.mulf %32, %33 : vector<16x64xf32>
    %cst_15 = arith.constant 4.471500e-02 : f32
    %35 = vector.broadcast %cst_15 : f32 to vector<16x64xf32>
    %36 = arith.mulf %35, %34 : vector<16x64xf32>
    %37 = arith.addf %32, %36 : vector<16x64xf32>
    %cst_16 = arith.constant 0.797884583 : f32
    %38 = vector.broadcast %cst_16 : f32 to vector<16x64xf32>
    %39 = arith.mulf %38, %37 : vector<16x64xf32>
    %40 = math.tanh %39 : vector<16x64xf32>
    %cst_17 = arith.constant 1.000000e+00 : f32
    %41 = vector.broadcast %cst_17 : f32 to vector<16x64xf32>
    %42 = arith.addf %41, %40 : vector<16x64xf32>
    %cst_18 = arith.constant 5.000000e-01 : f32
    %43 = vector.broadcast %cst_18 : f32 to vector<16x64xf32>
    %44 = arith.mulf %43, %42 : vector<16x64xf32>
    %45 = arith.mulf %32, %44 : vector<16x64xf32>
    %46 = arith.truncf %45 : vector<16x64xf32> to vector<16x64xbf16>
    %c0_19 = arith.constant 0 : index
    %c0_20 = arith.constant 0 : index
    %47 = vector.load %arg6[%c0_19, %c0_20] : memref<64x32xbf16, #tpu.memory_space<vmem>>, vector<64x32xbf16>
    %cst_21 = arith.constant dense<0.000000e+00> : vector<16x32xf32>
    %48 = tpu.matmul %46, %47, %cst_21 {dimension_numbers = #tpu.dot_dimension_numbers<[1], [0], [0], [1], [0, 0, 1, 1], [], []>} : vector<16x64xbf16>, vector<64x32xbf16>, vector<16x32xf32> -> vector<16x32xf32>
    %c0_22 = arith.constant 0 : index
    %c0_23 = arith.constant 0 : index
    %49 = vector.load %arg7[%c0_22, %c0_23] : memref<1x32xf32, #tpu.memory_space<vmem>>, vector<1x32xf32>
    %50 = vector.broadcast %49 : vector<1x32xf32> to vector<16x32xf32>
    %51 = arith.addf %48, %50 : vector<16x32xf32>
    %c0_24 = arith.constant 0 : index
    %c0_25 = arith.constant 0 : index
    %52 = vector.load %arg8[%c0_24, %c0_25] : memref<16x32xf32, #tpu.memory_space<vmem>>, vector<16x32xf32>
    tpu.vector_store %arg8[%c0_24, %c0_25], %51 {strides = array<i32>} : memref<16x32xf32, #tpu.memory_space<vmem>>, vector<16x32xf32>,
    return
  }
  func.func @transform_0(%arg0: i32) -> (i32, i32) {
    %c0_i32 = arith.constant 0 : i32
    %c0_i32_0 = arith.constant 0 : i32
    return %arg0, %c0_i32 : i32, i32
  }
  func.func @transform_1(%arg0: i32) -> (i32, i32) {
    %c0_i32 = arith.constant 0 : i32
    %c0_i32_0 = arith.constant 0 : i32
    %c0_i32_1 = arith.constant 0 : i32
    return %c0_i32, %c0_i32_0 : i32, i32
  }
  func.func @transform_2(%arg0: i32) -> (i32, i32) {
    %c0_i32 = arith.constant 0 : i32
    %c0_i32_0 = arith.constant 0 : i32
    %c0_i32_1 = arith.constant 0 : i32
    return %c0_i32, %c0_i32_0 : i32, i32
  }
  func.func @transform_3(%arg0: i32) -> (i32, i32) {
    %c0_i32 = arith.constant 0 : i32
    %c0_i32_0 = arith.constant 0 : i32
    %c0_i32_1 = arith.constant 0 : i32
    return %c0_i32, %c0_i32_0 : i32, i32
  }
  func.func @transform_4(%arg0: i32) -> (i32, i32) {
    %c0_i32 = arith.constant 0 : i32
    %c0_i32_0 = arith.constant 0 : i32
    %c0_i32_1 = arith.constant 0 : i32
    return %c0_i32, %c0_i32_0 : i32, i32
  }
  func.func @transform_5(%arg0: i32) -> (i32, i32) {
    %c0_i32 = arith.constant 0 : i32
    %c0_i32_0 = arith.constant 0 : i32
    %c0_i32_1 = arith.constant 0 : i32
    return %c0_i32, %c0_i32_0 : i32, i32
  }
  func.func @transform_6(%arg0: i32) -> (i32, i32) {
    %c0_i32 = arith.constant 0 : i32
    %c0_i32_0 = arith.constant 0 : i32
    %c0_i32_1 = arith.constant 0 : i32
    return %c0_i32, %c0_i32_0 : i32, i32
  }
  func.func @transform_7(%arg0: i32) -> (i32, i32) {
    %c0_i32 = arith.constant 0 : i32
    %c0_i32_0 = arith.constant 0 : i32
    return %arg0, %c0_i32 : i32, i32
  }
}

module attributes {stable_mosaic.version = 11 : i64} {
  func.func @_ff_kernel(%arg0: i32, %arg1: memref<16x32xf32, #tpu.memory_space<vmem>>, %arg2: memref<1x32xf32, #tpu.memory_space<vmem>>, %arg3: memref<1x32xf32, #tpu.memory_space<vmem>>, %arg4: memref<32x64xbf16, #tpu.memory_space<vmem>>, %arg5: memref<1x64xf32, #tpu.memory_space<vmem>>, %arg6: memref<64x32xbf16, #tpu.memory_space<vmem>>, %arg7: memref<1x32xf32, #tpu.memory_space<vmem>>, %arg8: memref<16x32xf32, #tpu.memory_space<vmem>>) attributes {dimension_semantics = [#tpu.dimension_semantics<parallel>], iteration_bounds = array<i64: 1>, scalar_prefetch = 0 : i64, scratch_operands = 0 : i64, tpu.core_type = #tpu.core_type<tc>, window_params = [{transform_indices = @transform_0, window_bounds = array<i64: 16, 32>}, {pipeline_mode = #tpu.pipeline_mode<synchronous>, transform_indices = @transform_1, window_bounds = array<i64: 1, 32>}, {pipeline_mode = #tpu.pipeline_mode<synchronous>, transform_indices = @transform_2, window_bounds = array<i64: 1, 32>}, {pipeline_mode = #tpu.pipeline_mode<synchronous>, transform_indices = @transform_3, window_bounds = array<i64: 32, 64>}, {pipeline_mode = #tpu.pipeline_mode<synchronous>, transform_indices = @transform_4, window_bounds = array<i64: 1, 64>}, {pipeline_mode = #tpu.pipeline_mode<synchronous>, transform_indices = @transform_5, window_bounds = array<i64: 64, 32>}, {pipeline_mode = #tpu.pipeline_mode<synchronous>, transform_indices = @transform_6, window_bounds = array<i64: 1, 32>}, {transform_indices = @transform_7, window_bounds = array<i64: 16, 32>}]} {
    %c0 = arith.constant 0 : index
    %c0_0 = arith.constant 0 : index
    %0 = vector.load %arg1[%c0, %c0_0] : memref<16x32xf32, #tpu.memory_space<vmem>>, vector<16x32xf32>
    %cst = arith.constant dense<0.000000e+00> : vector<16xf32>
    %1 = vector.multi_reduction <add>, %0, %cst [1] : vector<16x32xf32> to vector<16xf32>
    %2 = vector.shape_cast %1 : vector<16xf32> to vector<16x1xf32>
    %3 = arith.mulf %0, %0 : vector<16x32xf32>
    %cst_1 = arith.constant dense<0.000000e+00> : vector<16xf32>
    %4 = vector.multi_reduction <add>, %3, %cst_1 [1] : vector<16x32xf32> to vector<16xf32>
    %5 = vector.shape_cast %4 : vector<16xf32> to vector<16x1xf32>
    %cst_2 = arith.constant 3.125000e-02 : f32
    %6 = vector.broadcast %cst_2 : f32 to vector<16x1xf32>
    %7 = arith.mulf %2, %6 : vector<16x1xf32>
    %cst_3 = arith.constant 3.125000e-02 : f32
    %8 = vector.broadcast %cst_3 : f32 to vector<16x1xf32>
    %9 = arith.mulf %5, %8 : vector<16x1xf32>
    %10 = arith.mulf %7, %7 : vector<16x1xf32>
    %11 = arith.subf %9, %10 : vector<16x1xf32>
    %cst_4 = arith.constant 0.000000e+00 : f32
    %12 = vector.broadcast %cst_4 : f32 to vector<16x1xf32>
    %13 = arith.maximumf %11, %12 : vector<16x1xf32>
    %14 = vector.broadcast %7 : vector<16x1xf32> to vector<16x32xf32>
    %15 = arith.subf %0, %14 : vector<16x32xf32>
    %cst_5 = arith.constant 9.99999974E-6 : f32
    %16 = vector.broadcast %cst_5 : f32 to vector<16x1xf32>
    %17 = arith.addf %13, %16 : vector<16x1xf32>
    %18 = math.rsqrt %17 : vector<16x1xf32>
    %19 = vector.broadcast %18 : vector<16x1xf32> to vector<16x32xf32>
    %20 = arith.mulf %15, %19 : vector<16x32xf32>
    %c0_6 = arith.constant 0 : index
    %c0_7 = arith.constant 0 : index
    %21 = vector.load %arg2[%c0_6, %c0_7] : memref<1x32xf32, #tpu.memory_space<vmem>>, vector<1x32xf32>
    %22 = vector.broadcast %21 : vector<1x32xf32> to vector<16x32xf32>
    %23 = arith.mulf %20, %22 : vector<16x32xf32>
    %c0_8 = arith.constant 0 : index
    %c0_9 = arith.constant 0 : index
    %24 = vector.load %arg3[%c0_8, %c0_9] : memref<1x32xf32, #tpu.memory_space<vmem>>, vector<1x32xf32>
    %25 = vector.broadcast %24 : vector<1x32xf32> to vector<16x32xf32>
    %26 = arith.addf %23, %25 : vector<16x32xf32>
    %27 = arith.truncf %26 : vector<16x32xf32> to vector<16x32xbf16>
    %c0_10 = arith.constant 0 : index
    %c0_11 = arith.constant 0 : index
    %28 = vector.load %arg4[%c0_10, %c0_11] : memref<32x64xbf16, #tpu.memory_space<vmem>>, vector<32x64xbf16>
    %cst_12 = arith.constant dense<0.000000e+00> : vector<16x64xf32>
    %29 = tpu.matmul %27, %28, %cst_12 {dimension_numbers = #tpu.dot_dimension_numbers<[1], [0], [0], [1], [0, 0, 1, 1], [], []>} : vector<16x32xbf16>, vector<32x64xbf16>, vector<16x64xf32> -> vector<16x64xf32>
    %c0_13 = arith.constant 0 : index
    %c0_14 = arith.constant 0 : index
    %30 = vector.load %arg5[%c0_13, %c0_14] : memref<1x64xf32, #tpu.memory_space<vmem>>, vector<1x64xf32>
    %31 = vector.broadcast %30 : vector<1x64xf32> to vector<16x64xf32>
    %32 = arith.addf %29, %31 : vector<16x64xf32>
    %33 = arith.mulf %32, %32 : vector<16x64xf32>
    %34 = arith.mulf %32, %33 : vector<16x64xf32>
    %cst_15 = arith.constant 4.471500e-02 : f32
    %35 = vector.broadcast %cst_15 : f32 to vector<16x64xf32>
    %36 = arith.mulf %35, %34 : vector<16x64xf32>
    %37 = arith.addf %32, %36 : vector<16x64xf32>
    %cst_16 = arith.constant 0.797884583 : f32
    %38 = vector.broadcast %cst_16 : f32 to vector<16x64xf32>
    %39 = arith.mulf %38, %37 : vector<16x64xf32>
    %40 = math.tanh %39 : vector<16x64xf32>
    %cst_17 = arith.constant 1.000000e+00 : f32
    %41 = vector.broadcast %cst_17 : f32 to vector<16x64xf32>
    %42 = arith.addf %41, %40 : vector<16x64xf32>
    %cst_18 = arith.constant 5.000000e-01 : f32
    %43 = vector.broadcast %cst_18 : f32 to vector<16x64xf32>
    %44 = arith.mulf %43, %42 : vector<16x64xf32>
    %45 = arith.mulf %32, %44 : vector<16x64xf32>
    %46 = arith.truncf %45 : vector<16x64xf32> to vector<16x64xbf16>
    %c0_19 = arith.constant 0 : index
    %c0_20 = arith.constant 0 : index
    %47 = vector.load %arg6[%c0_19, %c0_20] : memref<64x32xbf16, #tpu.memory_space<vmem>>, vector<64x32xbf16>
    %cst_21 = arith.constant dense<0.000000e+00> : vector<16x32xf32>
    %48 = tpu.matmul %46, %47, %cst_21 {dimension_numbers = #tpu.dot_dimension_numbers<[1], [0], [0], [1], [0, 0, 1, 1], [], []>} : vector<16x64xbf16>, vector<64x32xbf16>, vector<16x32xf32> -> vector<16x32xf32>
    %c0_22 = arith.constant 0 : index
    %c0_23 = arith.constant 0 : index
    %49 = vector.load %arg7[%c0_22, %c0_23] : memref<1x32xf32, #tpu.memory_space<vmem>>, vector<1x32xf32>
    %50 = vector.broadcast %49 : vector<1x32xf32> to vector<16x32xf32>
    %51 = arith.addf %48, %50 : vector<16x32xf32>
    %c0_24 = arith.constant 0 : index
    %c0_25 = arith.constant 0 : index
    %52 = vector.load %arg8[%c0_24, %c0_25] : memref<16x32xf32, #tpu.memory_space<vmem>>, vector<16x32xf32>
    tpu.vector_store %arg8[%c0_24, %c0_25], %51 {strides = array<i32>} : memref<16x32xf32, #tpu.memory_space<vmem>>, vector<16x32xf32>,
    return
  }
  func.func @transform_0(%arg0: i32) -> (i32, i32) {
    %c0_i32 = arith.constant 0 : i32
    %c0_i32_0 = arith.constant 0 : i32
    return %arg0, %c0_i32 : i32, i32
  }
  func.func @transform_1(%arg0: i32) -> (i32, i32) {
    %c0_i32 = arith.constant 0 : i32
    %c0_i32_0 = arith.constant 0 : i32
    %c0_i32_1 = arith.constant 0 : i32
    return %c0_i32, %c0_i32_0 : i32, i32
  }
  func.func @transform_2(%arg0: i32) -> (i32, i32) {
    %c0_i32 = arith.constant 0 : i32
    %c0_i32_0 = arith.constant 0 : i32
    %c0_i32_1 = arith.constant 0 : i32
    return %c0_i32, %c0_i32_0 : i32, i32
  }
  func.func @transform_3(%arg0: i32) -> (i32, i32) {
    %c0_i32 = arith.constant 0 : i32
    %c0_i32_0 = arith.constant 0 : i32
    %c0_i32_1 = arith.constant 0 : i32
    return %c0_i32, %c0_i32_0 : i32, i32
  }
  func.func @transform_4(%arg0: i32) -> (i32, i32) {
    %c0_i32 = arith.constant 0 : i32
    %c0_i32_0 = arith.constant 0 : i32
    %c0_i32_1 = arith.constant 0 : i32
    return %c0_i32, %c0_i32_0 : i32, i32
  }
  func.func @transform_5(%arg0: i32) -> (i32, i32) {
    %c0_i32 = arith.constant 0 : i32
    %c0_i32_0 = arith.constant 0 : i32
    %c0_i32_1 = arith.constant 0 : i32
    return %c0_i32, %c0_i32_0 : i32, i32
  }
  func.func @transform_6(%arg0: i32) -> (i32, i32) {
    %c0_i32 = arith.constant 0 : i32
    %c0_i32_0 = arith.constant 0 : i32
    %c0_i32_1 = arith.constant 0 : i32
    return %c0_i32, %c0_i32_0 : i32, i32
  }
  func.func @transform_7(%arg0: i32) -> (i32, i32) {
    %c0_i32 = arith.constant 0 : i32
    %c0_i32_0 = arith.constant 0 : i32
    return %arg0, %c0_i32 : i32, i32
  }
}

</mosaic_0001>

<llo_original>
// kernel: tpu_custom_call.1
$region0: #{tpu_custom_call.1}
  #allocation0 [shape = 'u32[]', space=smem, size = 0x4, offset = 0x4, fixed_abs, tag = 'smem constant byte address 0x4 - core index']
  #allocation1 [shape = 'u32[72,128]{1,0:T(1,128)}', space=vmem, size = 0x9000, scoped, tag = 'internal scratch']
  %s0 = inlined_call_operand.vmem [shape: f32[16,32], index: 0, kind: input, shape index: {}]
  %s1 = inlined_call_operand.vmem [shape: f32[1,32], index: 1, kind: input, shape index: {}]
  %s2 = inlined_call_operand.vmem [shape: f32[1,32], index: 2, kind: input, shape index: {}]
  %s3 = inlined_call_operand.vmem [shape: bf16[32,64], index: 3, kind: input, shape index: {}]
  %s4 = inlined_call_operand.vmem [shape: f32[1,64], index: 4, kind: input, shape index: {}]
  %s5 = inlined_call_operand.vmem [shape: bf16[64,32], index: 5, kind: input, shape index: {}]
  %s6 = inlined_call_operand.vmem [shape: f32[1,32], index: 6, kind: input, shape index: {}]
  %s7 = inlined_call_operand.hbm [shape: f32[16,32], index: 7, kind: output, shape index: {}]
  %s8 = sld [smem:[#allocation0]]
  $region38: #{tpu_custom_call.1} parent=0
    _
  %s10 = ssub.s32 1, %s8
  %s11 = scalar_select 0, %s10, %s8
  $region1: #{tpu_custom_call.1} parent=0
    #allocation2 [shape = 'u8[8192]{0}', space=vmem, size = 0x2000, scoped, tag = 'output window, operand 0, single buffered']
    #allocation3 [shape = 's32[1]{0}', space=sflag, size = 0x4, scoped, tag = 'scoped memory for tpu_custom_call.1']
    %12 = vsyncpa [#allocation3], 0
    // Predicated region
    $region2: #{tpu_custom_call.1} parent=1 // pred_check
      _
    $region3: #{tpu_custom_call.1} parent=1 // pred_check_branch
      %14 = sbr.rel (0) target = $region5
    $region4: #{tpu_custom_call.1} parent=1 // pred_region
      _
    $region5: #{tpu_custom_call.1} parent=1 // pred_fallthru
      _
    // Predicated region
    $region6: #{tpu_custom_call.1} parent=1 // pred_check
      _
    $region7: #{tpu_custom_call.1} parent=1 // pred_check_branch
      %16 = sbr.rel (0) target = $region9
    $region8: #{tpu_custom_call.1} parent=1 // pred_region
      _
    $region9: #{tpu_custom_call.1} parent=1 // pred_fallthru
      _
    // Predicated region
    $region10: #{tpu_custom_call.1} parent=1 // pred_check
      _
    $region11: #{tpu_custom_call.1} parent=1 // pred_check_branch
      %18 = sbr.rel (0) target = $region13
    $region12: #{tpu_custom_call.1} parent=1 // pred_region
      _
    $region13: #{tpu_custom_call.1} parent=1 // pred_fallthru
      _
    // Predicated region
    $region14: #{tpu_custom_call.1} parent=1 // pred_check
      _
    $region15: #{tpu_custom_call.1} parent=1 // pred_check_branch
      %20 = sbr.rel (0) target = $region17
    $region16: #{tpu_custom_call.1} parent=1 // pred_region
      _
    $region17: #{tpu_custom_call.1} parent=1 // pred_fallthru
      _
    // Predicated region
    $region18: #{tpu_custom_call.1} parent=1 // pred_check
      _
    $region19: #{tpu_custom_call.1} parent=1 // pred_check_branch
      %22 = sbr.rel (0) target = $region21
    $region20: #{tpu_custom_call.1} parent=1 // pred_region
      _
    $region21: #{tpu_custom_call.1} parent=1 // pred_fallthru
      _
    // Predicated region
    $region22: #{tpu_custom_call.1} parent=1 // pred_check
      _
    $region23: #{tpu_custom_call.1} parent=1 // pred_check_branch
      %24 = sbr.rel (0) target = $region25
    $region24: #{tpu_custom_call.1} parent=1 // pred_region
      _
    $region25: #{tpu_custom_call.1} parent=1 // pred_fallthru
      _
    // Predicated region
    $region26: #{tpu_custom_call.1} parent=1 // pred_check
      _
    $region27: #{tpu_custom_call.1} parent=1 // pred_check_branch
      %26 = sbr.rel (0) target = $region29
    $region28: #{tpu_custom_call.1} parent=1 // pred_region
      _
    $region29: #{tpu_custom_call.1} parent=1 // pred_fallthru
      _
    %v28 = vld [vmem:[%s0] sm:$0xff]
    %v29 = vld [vmem:[%s0 + $0x8] sm:$0xff]
    %vm30 = vcmask 261120
    %v31 = vsel %vm30, %v28, 0.0
    %32 = vadd.xlane.f32.xlu0 %v31
    %v33 = vpop.xlane.xlu0 %32
    %v34 = vsel %vm30, %v29, 0.0
    %35 = vadd.xlane.f32.xlu0 %v34
    %v36 = vpop.xlane.xlu0 %35
    %v37 = vmul.f32 %v28, %v28
    %v38 = vmul.f32 %v29, %v29
    %v39 = vsel %vm30, %v37, 0.0
    %40 = vadd.xlane.f32.xlu0 %v39
    %v41 = vpop.xlane.xlu0 %40
    %v42 = vsel %vm30, %v38, 0.0
    %43 = vadd.xlane.f32.xlu0 %v42
    %v44 = vpop.xlane.xlu0 %43
    %v45 = vmul.f32 %v33, 0.03125
    %v46 = vmul.f32 %v36, 0.03125
    %v47 = vmul.f32 %v41, 0.03125
    %v48 = vmul.f32 %v44, 0.03125
    %v49 = vmul.f32 %v45, %v45
    %v50 = vmul.f32 %v46, %v46
    %v51 = vsub.f32 %v47, %v49
    %v52 = vsub.f32 %v48, %v50
    %v53 = vmax.f32 %v51, 0.0
    %v54 = vmax.f32 %v52, 0.0
    %v55 = vsub.f32 %v28, %v45
    %v56 = vsub.f32 %v29, %v46
    %v57 = vadd.f32 %v53, 1e-05
    %v58 = vadd.f32 %v54, 1e-05
    %v59 = vrsqrt.pop %v57
    %v60 = vmul.f32 %v59, %v57
    %v61 = vmul.f32 %v60, %v59
    %v62 = vmul.f32 0.5, %v61
    %v63 = vsub.f32 1.5, %v62
    %v64 = vmul.f32 %v59, %v63
    %vm65 = vweird.f32 %v57
    %vm66 = vweird.f32 %v59
    %vm67 = vmor %vm65, %vm66
    %v68 = vsel %vm67, %v59, %v64
    %v69 = vrsqrt.pop %v58
    %v70 = vmul.f32 %v69, %v58
    %v71 = vmul.f32 %v70, %v69
    %v72 = vmul.f32 0.5, %v71
    %v73 = vsub.f32 1.5, %v72
    %v74 = vmul.f32 %v69, %v73
    %vm75 = vweird.f32 %v58
    %vm76 = vweird.f32 %v69
    %vm77 = vmor %vm75, %vm76
    %v78 = vsel %vm77, %v69, %v74
    %v79 = vmul.f32 %v55, %v68
    %v80 = vmul.f32 %v56, %v78
    %v81 = vld [vmem:[%s1] sm:$0x1]
    %v83 = vperm.slane %v81, 0
    %v85 = vmul.f32 %v79, %v83
    %v86 = vmul.f32 %v80, %v83
    %v87 = vld [vmem:[%s2] sm:$0x1]
    %v89 = vperm.slane %v87, 0
    %v91 = vadd.f32 %v85, %v89
    %v92 = vadd.f32 %v86, %v89
    %v93 = vpack.c.bf16 %v92, %v91
    %v94 = vld [vmem:[%s3] sm:$0xf]
    %v95 = vld [vmem:[%s3 + $0x4] sm:$0xf]
    %v96 = vld [vmem:[%s3 + $0x8] sm:$0xf]
    %v97 = vld [vmem:[%s3 + $0xc] sm:$0xf]
    %v98 = vld [vmem:[%s4] sm:$0x1]
    %v100 = vperm.slane %v98, 0
    %v106 = vunpack.c.l.b16 %v94
    %v107 = vunpack.c.l.b16 %v95
    %v108 = vunpack.c.l.b16 %v96
    %v109 = vunpack.c.l.b16 %v97
    %v110 = vpack.c.b16 %v107, %v106
    %v111 = vpack.c.b16 %v109, %v108
    %v115 = vsel %vm30, %v93, 0
    %117 = vmatpush.bf16.msra.mxu0 0
    %118 = vmatpush.bf16.msra.mxu0 0
    %119 = vmatpush.bf16.msra.mxu0 0
    %120 = vmatpush.bf16.msra.mxu0 0
    %121 = vmatpush.bf16.msra.mxu0 0
    %122 = vmatpush.bf16.msra.mxu0 0
    %123 = vmatpush.bf16.msra.mxu0 %v111
    %124 = vmatpush.bf16.msra.mxu0 %v110
    %125 = vmatmul.bf16.gmra.mxu0 %v115
    %v126 = vpop.f32.mrf.mxu0
    %v127 = vadd.f32 %v100, %v126
    %v128 = vpop.f32.mrf.mxu0
    %v129 = vadd.f32 %v100, %v128
    %130 = vdwg.mxu0
    %v131 = vmul.f32 %v127, %v127
    %v132 = vmul.f32 %v129, %v129
    %v133 = vmul.f32 %v127, %v131
    %v134 = vmul.f32 %v129, %v132
    %v135 = vmul.f32 %v133, 0.044715
    %v136 = vmul.f32 %v134, 0.044715
    %v137 = vadd.f32 %v127, %v135
    %v138 = vadd.f32 %v129, %v136
    %v139 = vmul.f32 %v137, 0.7978846
    %v140 = vmul.f32 %v138, 0.7978846
    %v141 = vtanh.pop %v139
    %v142 = vtanh.pop %v140
    %v143 = vadd.f32 %v141, 1.0
    %v144 = vadd.f32 %v142, 1.0
    %v145 = vmul.f32 %v143, 0.5
    %v146 = vmul.f32 %v144, 0.5
    %v147 = vmul.f32 %v127, %v145
    %v148 = vmul.f32 %v129, %v146
    %v149 = vpack.c.bf16 %v148, %v147
    %v150 = vld [vmem:[%s5] sm:$0xf]
    %v151 = vld [vmem:[%s5 + $0x4] sm:$0xf]
    %v152 = vld [vmem:[%s5 + $0x8] sm:$0xf]
    %v153 = vld [vmem:[%s5 + $0xc] sm:$0xf]
    %v154 = vld [vmem:[%s5 + $0x10] sm:$0xf]
    %v155 = vld [vmem:[%s5 + $0x14] sm:$0xf]
    %v156 = vld [vmem:[%s5 + $0x18] sm:$0xf]
    %v157 = vld [vmem:[%s5 + $0x1c] sm:$0xf]
    %v158 = vld [vmem:[%s6] sm:$0x1]
    %v160 = vperm.slane %v158, 0
    %v170 = vunpack.c.l.b16 %v150
    %v171 = vunpack.c.l.b16 %v151
    %v172 = vunpack.c.l.b16 %v152
    %v173 = vunpack.c.l.b16 %v153
    %v174 = vunpack.c.l.b16 %v154
    %v175 = vunpack.c.l.b16 %v155
    %v176 = vunpack.c.l.b16 %v156
    %v177 = vunpack.c.l.b16 %v157
    %v178 = vpack.c.b16 %v171, %v170
    %v179 = vpack.c.b16 %v173, %v172
    %v180 = vpack.c.b16 %v175, %v174
    %v181 = vpack.c.b16 %v177, %v176
    %vm186 = vcmask 523264
    %v188 = vsel %vm186, %v149, 0
    %190 = vmatpush.bf16.msra.mxu0 0
    %191 = vmatpush.bf16.msra.mxu0 0
    %192 = vmatpush.bf16.msra.mxu0 0
    %193 = vmatpush.bf16.msra.mxu0 0
    %194 = vmatpush.bf16.msra.mxu0 %v181
    %195 = vmatpush.bf16.msra.mxu0 %v180
    %196 = vmatpush.bf16.msra.mxu0 %v179
    %197 = vmatpush.bf16.msra.mxu0 %v178
    %198 = vmatmul.bf16.gmra.mxu0 %v188
    %v199 = vpop.f32.mrf.mxu0
    %v200 = vadd.f32 %v160, %v199
    %v201 = vpop.f32.mrf.mxu0
    %v202 = vadd.f32 %v160, %v201
    %203 = vdwg.mxu0
    %204 = vst.msk [vmem:[#allocation2] sm:$0xff] %vm30, %v200
    %205 = vst.msk [vmem:[#allocation2 + $0x8] sm:$0xff] %vm30, %v202
    // Predicated region
    $region30: #{tpu_custom_call.1} parent=1 // pred_check
      _
    $region31: #{tpu_custom_call.1} parent=1 // pred_check_branch
      %207 = sbr.rel (0) target = $region33
    $region32: #{tpu_custom_call.1} parent=1 // pred_region
      %209 = vsyncadd [#allocation3], 0
      %s210 = sshll.u32 [#allocation2], 4
      %s211 = int_to_ptr.vmem [resolvable:$true] %s210
      %s212 = sshll.u32 %s7, 4
      %s213 = int_to_ptr.hbm [resolvable:$true] %s212
      %218 = dma.vmem_to_hbm [thread:$0]  %s211, 256, %s213, [#allocation3], 128, 128, 8
    $region33: #{tpu_custom_call.1} parent=1 // pred_fallthru
      _
    // Predicated region
    $region34: #{tpu_custom_call.1} parent=1 // pred_check
      _
    $region35: #{tpu_custom_call.1} parent=1 // pred_check_branch
      %220 = sbr.rel (0) target = $region37
    $region36: #{tpu_custom_call.1} parent=1 // pred_region
      %222 = dma.done [#allocation3], 256
    $region37: #{tpu_custom_call.1} parent=1 // pred_fallthru
      _
    %223 = vsyncpa [#allocation3], 1

// kernel: tpu_custom_call.1
$region0: #{tpu_custom_call.1}
  #allocation0 [shape = 'u32[]', space=smem, size = 0x4, offset = 0x4, fixed_abs, tag = 'smem constant byte address 0x4 - core index']
  #allocation1 [shape = 'u32[72,128]{1,0:T(1,128)}', space=vmem, size = 0x9000, scoped, tag = 'internal scratch']
  %s0 = inlined_call_operand.vmem [shape: f32[16,32], index: 0, kind: input, shape index: {}]
  %s1 = inlined_call_operand.vmem [shape: f32[1,32], index: 1, kind: input, shape index: {}]
  %s2 = inlined_call_operand.vmem [shape: f32[1,32], index: 2, kind: input, shape index: {}]
  %s3 = inlined_call_operand.vmem [shape: bf16[32,64], index: 3, kind: input, shape index: {}]
  %s4 = inlined_call_operand.vmem [shape: f32[1,64], index: 4, kind: input, shape index: {}]
  %s5 = inlined_call_operand.vmem [shape: bf16[64,32], index: 5, kind: input, shape index: {}]
  %s6 = inlined_call_operand.vmem [shape: f32[1,32], index: 6, kind: input, shape index: {}]
  %s7 = inlined_call_operand.hbm [shape: f32[16,32], index: 7, kind: output, shape index: {}]
  %s8 = sld [smem:[#allocation0]]
  $region38: #{tpu_custom_call.1} parent=0
    _
  %s10 = ssub.s32 1, %s8
  %s11 = scalar_select 0, %s10, %s8
  $region1: #{tpu_custom_call.1} parent=0
    #allocation2 [shape = 'u8[8192]{0}', space=vmem, size = 0x2000, scoped, tag = 'output window, operand 0, single buffered']
    #allocation3 [shape = 's32[1]{0}', space=sflag, size = 0x4, scoped, tag = 'scoped memory for tpu_custom_call.1']
    %12 = vsyncpa [#allocation3], 0
    // Predicated region
    $region2: #{tpu_custom_call.1} parent=1 // pred_check
      _
    $region3: #{tpu_custom_call.1} parent=1 // pred_check_branch
      %14 = sbr.rel (0) target = $region5
    $region4: #{tpu_custom_call.1} parent=1 // pred_region
      _
    $region5: #{tpu_custom_call.1} parent=1 // pred_fallthru
      _
    // Predicated region
    $region6: #{tpu_custom_call.1} parent=1 // pred_check
      _
    $region7: #{tpu_custom_call.1} parent=1 // pred_check_branch
      %16 = sbr.rel (0) target = $region9
    $region8: #{tpu_custom_call.1} parent=1 // pred_region
      _
    $region9: #{tpu_custom_call.1} parent=1 // pred_fallthru
      _
    // Predicated region
    $region10: #{tpu_custom_call.1} parent=1 // pred_check
      _
    $region11: #{tpu_custom_call.1} parent=1 // pred_check_branch
      %18 = sbr.rel (0) target = $region13
    $region12: #{tpu_custom_call.1} parent=1 // pred_region
      _
    $region13: #{tpu_custom_call.1} parent=1 // pred_fallthru
      _
    // Predicated region
    $region14: #{tpu_custom_call.1} parent=1 // pred_check
      _
    $region15: #{tpu_custom_call.1} parent=1 // pred_check_branch
      %20 = sbr.rel (0) target = $region17
    $region16: #{tpu_custom_call.1} parent=1 // pred_region
      _
    $region17: #{tpu_custom_call.1} parent=1 // pred_fallthru
      _
    // Predicated region
    $region18: #{tpu_custom_call.1} parent=1 // pred_check
      _
    $region19: #{tpu_custom_call.1} parent=1 // pred_check_branch
      %22 = sbr.rel (0) target = $region21
    $region20: #{tpu_custom_call.1} parent=1 // pred_region
      _
    $region21: #{tpu_custom_call.1} parent=1 // pred_fallthru
      _
    // Predicated region
    $region22: #{tpu_custom_call.1} parent=1 // pred_check
      _
    $region23: #{tpu_custom_call.1} parent=1 // pred_check_branch
      %24 = sbr.rel (0) target = $region25
    $region24: #{tpu_custom_call.1} parent=1 // pred_region
      _
    $region25: #{tpu_custom_call.1} parent=1 // pred_fallthru
      _
    // Predicated region
    $region26: #{tpu_custom_call.1} parent=1 // pred_check
      _
    $region27: #{tpu_custom_call.1} parent=1 // pred_check_branch
      %26 = sbr.rel (0) target = $region29
    $region28: #{tpu_custom_call.1} parent=1 // pred_region
      _
    $region29: #{tpu_custom_call.1} parent=1 // pred_fallthru
      _
    %v28 = vld [vmem:[%s0] sm:$0xff]
    %v29 = vld [vmem:[%s0 + $0x8] sm:$0xff]
    %vm30 = vcmask 261120
    %v31 = vsel %vm30, %v28, 0.0
    %32 = vadd.xlane.f32.xlu0 %v31
    %v33 = vpop.xlane.xlu0 %32
    %v34 = vsel %vm30, %v29, 0.0
    %35 = vadd.xlane.f32.xlu0 %v34
    %v36 = vpop.xlane.xlu0 %35
    %v37 = vmul.f32 %v28, %v28
    %v38 = vmul.f32 %v29, %v29
    %v39 = vsel %vm30, %v37, 0.0
    %40 = vadd.xlane.f32.xlu0 %v39
    %v41 = vpop.xlane.xlu0 %40
    %v42 = vsel %vm30, %v38, 0.0
    %43 = vadd.xlane.f32.xlu0 %v42
    %v44 = vpop.xlane.xlu0 %43
    %v45 = vmul.f32 %v33, 0.03125
    %v46 = vmul.f32 %v36, 0.03125
    %v47 = vmul.f32 %v41, 0.03125
    %v48 = vmul.f32 %v44, 0.03125
    %v49 = vmul.f32 %v45, %v45
    %v50 = vmul.f32 %v46, %v46
    %v51 = vsub.f32 %v47, %v49
    %v52 = vsub.f32 %v48, %v50
    %v53 = vmax.f32 %v51, 0.0
    %v54 = vmax.f32 %v52, 0.0
    %v55 = vsub.f32 %v28, %v45
    %v56 = vsub.f32 %v29, %v46
    %v57 = vadd.f32 %v53, 1e-05
    %v58 = vadd.f32 %v54, 1e-05
    %v59 = vrsqrt.pop %v57
    %v60 = vmul.f32 %v59, %v57
    %v61 = vmul.f32 %v60, %v59
    %v62 = vmul.f32 0.5, %v61
    %v63 = vsub.f32 1.5, %v62
    %v64 = vmul.f32 %v59, %v63
    %vm65 = vweird.f32 %v57
    %vm66 = vweird.f32 %v59
    %vm67 = vmor %vm65, %vm66
    %v68 = vsel %vm67, %v59, %v64
    %v69 = vrsqrt.pop %v58
    %v70 = vmul.f32 %v69, %v58
    %v71 = vmul.f32 %v70, %v69
    %v72 = vmul.f32 0.5, %v71
    %v73 = vsub.f32 1.5, %v72
    %v74 = vmul.f32 %v69, %v73
    %vm75 = vweird.f32 %v58
    %vm76 = vweird.f32 %v69
    %vm77 = vmor %vm75, %vm76
    %v78 = vsel %vm77, %v69, %v74
    %v79 = vmul.f32 %v55, %v68
    %v80 = vmul.f32 %v56, %v78
    %v81 = vld [vmem:[%s1] sm:$0x1]
    %v83 = vperm.slane %v81, 0
    %v85 = vmul.f32 %v79, %v83
    %v86 = vmul.f32 %v80, %v83
    %v87 = vld [vmem:[%s2] sm:$0x1]
    %v89 = vperm.slane %v87, 0
    %v91 = vadd.f32 %v85, %v89
    %v92 = vadd.f32 %v86, %v89
    %v93 = vpack.c.bf16 %v92, %v91
    %v94 = vld [vmem:[%s3] sm:$0xf]
    %v95 = vld [vmem:[%s3 + $0x4] sm:$0xf]
    %v96 = vld [vmem:[%s3 + $0x8] sm:$0xf]
    %v97 = vld [vmem:[%s3 + $0xc] sm:$0xf]
    %v98 = vld [vmem:[%s4] sm:$0x1]
    %v100 = vperm.slane %v98, 0
    %v106 = vunpack.c.l.b16 %v94
    %v107 = vunpack.c.l.b16 %v95
    %v108 = vunpack.c.l.b16 %v96
    %v109 = vunpack.c.l.b16 %v97
    %v110 = vpack.c.b16 %v107, %v106
    %v111 = vpack.c.b16 %v109, %v108
    %v115 = vsel %vm30, %v93, 0
    %117 = vmatpush.bf16.msra.mxu0 0
    %118 = vmatpush.bf16.msra.mxu0 0
    %119 = vmatpush.bf16.msra.mxu0 0
    %120 = vmatpush.bf16.msra.mxu0 0
    %121 = vmatpush.bf16.msra.mxu0 0
    %122 = vmatpush.bf16.msra.mxu0 0
    %123 = vmatpush.bf16.msra.mxu0 %v111
    %124 = vmatpush.bf16.msra.mxu0 %v110
    %125 = vmatmul.bf16.gmra.mxu0 %v115
    %v126 = vpop.f32.mrf.mxu0
    %v127 = vadd.f32 %v100, %v126
    %v128 = vpop.f32.mrf.mxu0
    %v129 = vadd.f32 %v100, %v128
    %130 = vdwg.mxu0
    %v131 = vmul.f32 %v127, %v127
    %v132 = vmul.f32 %v129, %v129
    %v133 = vmul.f32 %v127, %v131
    %v134 = vmul.f32 %v129, %v132
    %v135 = vmul.f32 %v133, 0.044715
    %v136 = vmul.f32 %v134, 0.044715
    %v137 = vadd.f32 %v127, %v135
    %v138 = vadd.f32 %v129, %v136
    %v139 = vmul.f32 %v137, 0.7978846
    %v140 = vmul.f32 %v138, 0.7978846
    %v141 = vtanh.pop %v139
    %v142 = vtanh.pop %v140
    %v143 = vadd.f32 %v141, 1.0
    %v144 = vadd.f32 %v142, 1.0
    %v145 = vmul.f32 %v143, 0.5
    %v146 = vmul.f32 %v144, 0.5
    %v147 = vmul.f32 %v127, %v145
    %v148 = vmul.f32 %v129, %v146
    %v149 = vpack.c.bf16 %v148, %v147
    %v150 = vld [vmem:[%s5] sm:$0xf]
    %v151 = vld [vmem:[%s5 + $0x4] sm:$0xf]
    %v152 = vld [vmem:[%s5 + $0x8] sm:$0xf]
    %v153 = vld [vmem:[%s5 + $0xc] sm:$0xf]
    %v154 = vld [vmem:[%s5 + $0x10] sm:$0xf]
    %v155 = vld [vmem:[%s5 + $0x14] sm:$0xf]
    %v156 = vld [vmem:[%s5 + $0x18] sm:$0xf]
    %v157 = vld [vmem:[%s5 + $0x1c] sm:$0xf]
    %v158 = vld [vmem:[%s6] sm:$0x1]
    %v160 = vperm.slane %v158, 0
    %v170 = vunpack.c.l.b16 %v150
    %v171 = vunpack.c.l.b16 %v151
    %v172 = vunpack.c.l.b16 %v152
    %v173 = vunpack.c.l.b16 %v153
    %v174 = vunpack.c.l.b16 %v154
    %v175 = vunpack.c.l.b16 %v155
    %v176 = vunpack.c.l.b16 %v156
    %v177 = vunpack.c.l.b16 %v157
    %v178 = vpack.c.b16 %v171, %v170
    %v179 = vpack.c.b16 %v173, %v172
    %v180 = vpack.c.b16 %v175, %v174
    %v181 = vpack.c.b16 %v177, %v176
    %vm186 = vcmask 523264
    %v188 = vsel %vm186, %v149, 0
    %190 = vmatpush.bf16.msra.mxu0 0
    %191 = vmatpush.bf16.msra.mxu0 0
    %192 = vmatpush.bf16.msra.mxu0 0
    %193 = vmatpush.bf16.msra.mxu0 0
    %194 = vmatpush.bf16.msra.mxu0 %v181
    %195 = vmatpush.bf16.msra.mxu0 %v180
    %196 = vmatpush.bf16.msra.mxu0 %v179
    %197 = vmatpush.bf16.msra.mxu0 %v178
    %198 = vmatmul.bf16.gmra.mxu0 %v188
    %v199 = vpop.f32.mrf.mxu0
    %v200 = vadd.f32 %v160, %v199
    %v201 = vpop.f32.mrf.mxu0
    %v202 = vadd.f32 %v160, %v201
    %203 = vdwg.mxu0
    %204 = vst.msk [vmem:[#allocation2] sm:$0xff] %vm30, %v200
    %205 = vst.msk [vmem:[#allocation2 + $0x8] sm:$0xff] %vm30, %v202
    // Predicated region
    $region30: #{tpu_custom_call.1} parent=1 // pred_check
      _
    $region31: #{tpu_custom_call.1} parent=1 // pred_check_branch
      %207 = sbr.rel (0) target = $region33
    $region32: #{tpu_custom_call.1} parent=1 // pred_region
      %209 = vsyncadd [#allocation3], 0
      %s210 = sshll.u32 [#allocation2], 4
      %s211 = int_to_ptr.vmem [resolvable:$true] %s210
      %s212 = sshll.u32 %s7, 4
      %s213 = int_to_ptr.hbm [resolvable:$true] %s212
      %218 = dma.vmem_to_hbm [thread:$0]  %s211, 256, %s213, [#allocation3], 128, 128, 8
    $region33: #{tpu_custom_call.1} parent=1 // pred_fallthru
      _
    // Predicated region
    $region34: #{tpu_custom_call.1} parent=1 // pred_check
      _
    $region35: #{tpu_custom_call.1} parent=1 // pred_check_branch
      %220 = sbr.rel (0) target = $region37
    $region36: #{tpu_custom_call.1} parent=1 // pred_region
      %222 = dma.done [#allocation3], 256
    $region37: #{tpu_custom_call.1} parent=1 // pred_fallthru
      _
    %223 = vsyncpa [#allocation3], 1

</llo_original>
